<compile_context>
chip_gen: v5e
topology: v5e:2x2
jax: 0.10.0
libtpu: 0.0.40
codegen_flags: <defaults>
</compile_context>

<pallas_src>
import math
from functools import partial

import jax
import jax.numpy as jnp
from jax.experimental import pallas as pl
from jax.experimental.pallas import tpu as pltpu


def _round_up(a: int, m: int) -> int:
    return -(-a // m) * m


def _is_v7x() -> bool:
    try:
        return "v7" in jax.devices()[0].device_kind.lower()
    except Exception:
        return False


_V7X = _is_v7x()
# Per-grid-step byte target (x_in + out + pe tiles together) and scoped-VMEM
# request. Bigger steps on v7x (3.2 TB/s HBM) amortise the ~0.35 us per-step
# overhead; 4-5 MiB tiles are already ~85% of roofline on v5e/v6e.
_STEP_TARGET = (16 if _V7X else 10) * 1024 * 1024
_VMEM_LIMIT = (48 if _V7X else 32) * 1024 * 1024


def _make_pe(d_model: int, max_len: int = 5000, dtype=jnp.float32) -> jnp.ndarray:
    """Positional-encoding buffer, same math as the PyTorch __init__."""
    position = jnp.arange(max_len, dtype=jnp.float32)[:, None]              # [max_len, 1]
    div_term = jnp.exp(
        jnp.arange(0, d_model, 2, dtype=jnp.float32) * (-math.log(10000.0) / d_model)
    )                                                                        # [d_model/2]
    pe = jnp.zeros((max_len, 1, d_model), dtype=jnp.float32)
    pe = pe.at[:, 0, 0::2].set(jnp.sin(position * div_term))
    pe = pe.at[:, 0, 1::2].set(jnp.cos(position * div_term))
    return pe.astype(dtype)


def _choose_seq_tile(seq_len: int, step_row_bytes: int, pack: int,
                     step_target_bytes: int) -> int:
    """Seq-tile size so that one grid step's (x_in + out + pe) tiles stay under
    `step_target_bytes`.  Rounded DOWN to the dtype sublane packing, capped at
    1024 rows, and split so the grid has >=2 steps whenever S allows (so both
    v7x TensorCores get work)."""
    ts = max(1, step_target_bytes // max(1, step_row_bytes))
    ts = min(ts, 1024, seq_len)
    if ts >= pack and seq_len >= pack:
        ts = (ts // pack) * pack
    elif ts >= 8 and seq_len >= 8:
        ts = (ts // 8) * 8
    if ts >= seq_len and seq_len > 8:
        half = _round_up((seq_len + 1) // 2, 8)
        ts = min(ts, max(8, half))
    return max(1, ts)


def _pos_enc_kernel_3d(x_ref, pe_ref, o_ref):
    # x_ref/o_ref: (TS, B, TD); pe_ref: (TS, 1, TD) f32. Add in f32, cast on
    # store; pe broadcasts over the batch (sublane) axis.
    o_ref[...] = (x_ref[...].astype(jnp.float32)
                  + pe_ref[...].astype(jnp.float32)).astype(o_ref.dtype)


def _pos_enc_kernel_2d(x_ref, pe_ref, o_ref, *, batch: int, d_model: int):
    # Lane-dense path: x_ref/o_ref: (TS, B*D); pe_ref: (TS, D), D % 128 == 0.
    # Static per-batch loop of lane-aligned slice adds; no (TS, B*D) pe temp.
    pe = pe_ref[...].astype(jnp.float32)                     # read once
    for b in range(batch):
        lo = b * d_model
        hi = lo + d_model
        o_ref[:, lo:hi] = (x_ref[:, lo:hi].astype(jnp.float32) + pe
                           ).astype(o_ref.dtype)


def positional_encoding_forward(x: jnp.ndarray, pe: jnp.ndarray) -> jnp.ndarray:
    """x: [S, B, D], pe: [max_len, 1, D]  ->  x + pe[:S]   (eval-mode forward).

    For the `input_output_aliases` below to actually reuse x's HBM buffer,
    donate x at the jit boundary: `jax.jit(positional_encoding_forward,
    donate_argnums=0)` — otherwise XLA inserts a defensive copy of x.

    # TODO(synk): training-mode dropout (p=0.1) is not applied; this matches
    # the PyTorch module in eval mode only.
    """
    S, B, D = x.shape
    max_len = pe.shape[0]
    itemsize = jnp.dtype(x.dtype).itemsize
    pe_item = jnp.dtype(pe.dtype).itemsize
    pack = max(1, 32 // itemsize)            # sublane packing: 8 f32 / 16 bf16 / 32 i8

    compiler_params_1d = pltpu.CompilerParams(
        dimension_semantics=("parallel",),
        vmem_limit_bytes=_VMEM_LIMIT,
    )
    compiler_params_2d = pltpu.CompilerParams(
        dimension_semantics=("parallel", "parallel"),
        vmem_limit_bytes=_VMEM_LIMIT,
    )

    # ---------------- Lane-dense flattened path ----------------
    if D % 128 == 0 and S >= 8:
        bd = B * D
        step_row = 2 * bd * itemsize + D * pe_item       # x_in + out + pe per seq row
        ts = _choose_seq_tile(S, step_row, pack, _STEP_TARGET)
        if ts % 8 == 0:                                   # (8,128) rule for the 2-D block
            x2 = x.reshape(S, bd)                         # layout-preserving
            pe2 = pe.reshape(max_len, D)                  # kept in its own (f32) dtype
            out2 = pl.pallas_call(
                partial(_pos_enc_kernel_2d, batch=B, d_model=D),
                out_shape=jax.ShapeDtypeStruct((S, bd), x.dtype),
                grid_spec=pltpu.PrefetchScalarGridSpec(
                    num_scalar_prefetch=0,
                    grid=(pl.cdiv(S, ts),),
                    in_specs=[
                        pl.BlockSpec((ts, bd), lambda i: (i, 0)),
                        pl.BlockSpec((ts, D), lambda i: (i, 0)),   # slices pe[:S]
                    ],
                    out_specs=pl.BlockSpec((ts, bd), lambda i: (i, 0)),
                ),
                compiler_params=compiler_params_1d,
                input_output_aliases={0: 0},
            )(x2, pe2)
            return out2.reshape(S, B, D)

    # ---------------- General 3-D path (optionally lane-tiled) ----------------
    # Padded VMEM footprint per seq row: x/out pad B up to the sublane pack and
    # D up to 128; pe's size-1 batch dim pads to 8 sublanes.
    padB = _round_up(B, pack)

    def row_bytes_3d(td):
        td_pad = _round_up(td, 128)
        return (2 * padB * itemsize + 8 * pe_item) * td_pad

    td = D
    if D % 128 == 0 and D > 128:
        # Shrink the lane tile (multiples of 128) until an 8-row step fits.
        while td > 128 and 8 * row_bytes_3d(td) > _STEP_TARGET:
            td = max(128, ((td // 2) // 128) * 128)

    ts = _choose_seq_tile(S, row_bytes_3d(td), pack, _STEP_TARGET)

    return pl.pallas_call(
        _pos_enc_kernel_3d,
        out_shape=jax.ShapeDtypeStruct((S, B, D), x.dtype),
        grid_spec=pltpu.PrefetchScalarGridSpec(
            num_scalar_prefetch=0,
            grid=(pl.cdiv(S, ts), pl.cdiv(D, td)),
            in_specs=[
                pl.BlockSpec((ts, B, td), lambda i, j: (i, 0, j)),
                pl.BlockSpec((ts, 1, td), lambda i, j: (i, 0, j)),  # slices pe[:S]
            ],
            out_specs=pl.BlockSpec((ts, B, td), lambda i, j: (i, 0, j)),
        ),
        compiler_params=compiler_params_2d,
        input_output_aliases={0: 0},
    )(x, pe)


if __name__ == "__main__":
    # donate_argnums=0 so input_output_aliases actually reuses x's HBM buffer.
    pos_enc = jax.jit(positional_encoding_forward, donate_argnums=0)
    key = jax.random.PRNGKey(0)
    k1, k2, k3 = jax.random.split(key, 3)
    MAX_LEN = 64  # small max_len (instead of 5000) to keep the demo buffer tiny

    # Case 1: general [S, B, D] path (D < 128 keeps full trailing dims).
    S, B, D = 8, 2, 32
    x = jax.random.normal(k1, (S, B, D), dtype=jnp.float32)
    pe = _make_pe(D, max_len=MAX_LEN)
    ref = x + pe[:S]                                   # compute ref before donation
    out = jax.block_until_ready(pos_enc(x, pe))
    assert out.shape == (S, B, D)
    assert jnp.allclose(out, ref, atol=1e-6, rtol=1e-6)

    # Case 2: lane-dense path (D % 128 == 0 -> flattened (S, B*D) tiles, 2 grid steps).
    S2, B2, D2 = 16, 2, 128
    x2 = jax.random.normal(k2, (S2, B2, D2), dtype=jnp.float32)
    pe2 = _make_pe(D2, max_len=MAX_LEN)
    ref2 = x2 + pe2[:S2]
    out2 = jax.block_until_ready(pos_enc(x2, pe2))
    assert out2.shape == (S2, B2, D2)
    assert jnp.allclose(out2, ref2, atol=1e-6, rtol=1e-6)

    # Case 3: bf16 activations against the f32 pe buffer (add in f32, store bf16).
    xb = jax.random.normal(k3, (S, B, D), dtype=jnp.bfloat16)
    refb = xb.astype(jnp.float32) + pe[:S]
    outb = jax.block_until_ready(pos_enc(xb, pe))
    assert outb.dtype == jnp.bfloat16
    assert jnp.allclose(outb.astype(jnp.float32), refb, atol=1e-1, rtol=1e-1)

    print("KERNEL_OK")
</pallas_src>

<mosaic_0001>
module attributes {stable_mosaic.version = 11 : i64} {
  func.func @_pos_enc_kernel_3d(%arg0: i32, %arg1: i32, %arg2: memref<8x2x32xf32, #tpu.memory_space<vmem>>, %arg3: memref<8x1x32xf32, #tpu.memory_space<vmem>>, %arg4: memref<8x2x32xf32, #tpu.memory_space<vmem>>) attributes {dimension_semantics = [#tpu.dimension_semantics<parallel>, #tpu.dimension_semantics<parallel>], iteration_bounds = array<i64: 1, 1>, scalar_prefetch = 0 : i64, scratch_operands = 0 : i64, tpu.core_type = #tpu.core_type<tc>, window_params = [{transform_indices = @transform_0, window_bounds = array<i64: 8, 2, 32>}, {transform_indices = @transform_1, window_bounds = array<i64: 8, 1, 32>}, {transform_indices = @transform_2, window_bounds = array<i64: 8, 2, 32>}]} {
    %c0 = arith.constant 0 : index
    %c0_0 = arith.constant 0 : index
    %c0_1 = arith.constant 0 : index
    %0 = vector.load %arg2[%c0, %c0_0, %c0_1] : memref<8x2x32xf32, #tpu.memory_space<vmem>>, vector<8x2x32xf32>
    %c0_2 = arith.constant 0 : index
    %c0_3 = arith.constant 0 : index
    %c0_4 = arith.constant 0 : index
    %1 = vector.load %arg3[%c0_2, %c0_3, %c0_4] : memref<8x1x32xf32, #tpu.memory_space<vmem>>, vector<8x1x32xf32>
    %2 = vector.broadcast %1 : vector<8x1x32xf32> to vector<8x2x32xf32>
    %3 = arith.addf %0, %2 : vector<8x2x32xf32>
    %c0_5 = arith.constant 0 : index
    %c0_6 = arith.constant 0 : index
    %c0_7 = arith.constant 0 : index
    %4 = vector.load %arg4[%c0_5, %c0_6, %c0_7] : memref<8x2x32xf32, #tpu.memory_space<vmem>>, vector<8x2x32xf32>
    tpu.vector_store %arg4[%c0_5, %c0_6, %c0_7], %3 {strides = array<i32>} : memref<8x2x32xf32, #tpu.memory_space<vmem>>, vector<8x2x32xf32>,
    return
  }
  func.func @transform_0(%arg0: i32, %arg1: i32) -> (i32, i32, i32) {
    %c0_i32 = arith.constant 0 : i32
    %c0_i32_0 = arith.constant 0 : i32
    return %arg0, %c0_i32, %arg1 : i32, i32, i32
  }
  func.func @transform_1(%arg0: i32, %arg1: i32) -> (i32, i32, i32) {
    %c0_i32 = arith.constant 0 : i32
    %c0_i32_0 = arith.constant 0 : i32
    return %arg0, %c0_i32, %arg1 : i32, i32, i32
  }
  func.func @transform_2(%arg0: i32, %arg1: i32) -> (i32, i32, i32) {
    %c0_i32 = arith.constant 0 : i32
    %c0_i32_0 = arith.constant 0 : i32
    return %arg0, %c0_i32, %arg1 : i32, i32, i32
  }
}

</mosaic_0001>

<llo_original>
// kernel: positional_encoding_forward.1
$region0: #{positional_encoding_forward.1}
  #allocation0 [shape = 'u32[]', space=smem, size = 0x4, offset = 0x4, fixed_abs, tag = 'smem constant byte address 0x4 - core index']
  #allocation1 [shape = 'u32[72,128]{1,0:T(1,128)}', space=vmem, size = 0x9000, scoped, tag = 'internal scratch']
  %s0 = inlined_call_operand.hbm [shape: f32[8,2,32], index: 0, kind: input, shape index: {}, may-alias: {0,2}]
  %s1 = inlined_call_operand.vmem [shape: f32[64,1,32], index: 1, kind: input, shape index: {}]
  %s2 = inlined_call_operand.hbm [shape: f32[8,2,32], index: 2, kind: output, shape index: {}, may-alias: {0,2}]
  %s3 = sld [smem:[#allocation0]]
  $region22: #{positional_encoding_forward.1} parent=0
    _
  %s5 = ssub.s32 1, %s3
  %s6 = scalar_select 0, %s5, %s3
  $region1: #{positional_encoding_forward.1} parent=0
    #allocation2 [shape = 'u8[8192]{0}', space=vmem, size = 0x2000, scoped, tag = 'input window, operand 0, single buffered']
    #allocation3 [shape = 's32[1]{0}', space=sflag, size = 0x4, scoped, tag = 'scoped memory for positional_encoding_forward.1']
    #allocation4 [shape = 's32[1]{0}', space=sflag, size = 0x4, scoped, tag = 'scoped memory for positional_encoding_forward.1']
    #allocation5 [shape = 'u8[8192]{0}', space=vmem, size = 0x2000, scoped, tag = 'output window, operand 0, single buffered']
    %7 = vsyncpa [#allocation3], 0
    %8 = vsyncpa [#allocation4], 0
    // Predicated region
    $region2: #{positional_encoding_forward.1} parent=1 // pred_check
      _
    $region3: #{positional_encoding_forward.1} parent=1 // pred_check_branch
      %10 = sbr.rel (0) target = $region5
    $region4: #{positional_encoding_forward.1} parent=1 // pred_region
      %12 = vsyncadd [#allocation3], 0
      %s13 = sshll.u32 %s0, 4
      %s14 = int_to_ptr.hbm [resolvable:$true] %s13
      %s15 = sshll.u32 [#allocation2], 4
      %s16 = int_to_ptr.vmem [resolvable:$true] %s15
      %21 = dma.hbm_to_vmem [thread:$0]  %s14, 256, %s16, [#allocation3], 32, 32, 2
    $region5: #{positional_encoding_forward.1} parent=1 // pred_fallthru
      _
    // Predicated region
    $region6: #{positional_encoding_forward.1} parent=1 // pred_check
      _
    $region7: #{positional_encoding_forward.1} parent=1 // pred_check_branch
      %23 = sbr.rel (0) target = $region9
    $region8: #{positional_encoding_forward.1} parent=1 // pred_region
      _
    $region9: #{positional_encoding_forward.1} parent=1 // pred_fallthru
      _
    // Predicated region
    $region10: #{positional_encoding_forward.1} parent=1 // pred_check
      _
    $region11: #{positional_encoding_forward.1} parent=1 // pred_check_branch
      %25 = sbr.rel (0) target = $region13
    $region12: #{positional_encoding_forward.1} parent=1 // pred_region
      %27 = dma.done [#allocation3], 256
    $region13: #{positional_encoding_forward.1} parent=1 // pred_fallthru
      _
    %v28 = vld [vmem:[#allocation2] sm:$0x3]
    %v29 = vld [vmem:[#allocation2 + $0x2] sm:$0x3]
    %v30 = vld [vmem:[#allocation2 + $0x4] sm:$0x3]
    %v31 = vld [vmem:[#allocation2 + $0x6] sm:$0x3]
    %v32 = vld [vmem:[#allocation2 + $0x8] sm:$0x3]
    %v33 = vld [vmem:[#allocation2 + $0xa] sm:$0x3]
    %v34 = vld [vmem:[#allocation2 + $0xc] sm:$0x3]
    %v35 = vld [vmem:[#allocation2 + $0xe] sm:$0x3]
    %v36 = vld [vmem:[%s1] sm:$0x1]
    %v37 = vld [vmem:[%s1 + $0x1] sm:$0x1]
    %v38 = vld [vmem:[%s1 + $0x2] sm:$0x1]
    %v39 = vld [vmem:[%s1 + $0x3] sm:$0x1]
    %v40 = vld [vmem:[%s1 + $0x4] sm:$0x1]
    %v41 = vld [vmem:[%s1 + $0x5] sm:$0x1]
    %v42 = vld [vmem:[%s1 + $0x6] sm:$0x1]
    %v43 = vld [vmem:[%s1 + $0x7] sm:$0x1]
    %v52 = vperm.slane %v36, 0
    %v53 = vperm.slane %v37, 0
    %v54 = vperm.slane %v38, 0
    %v55 = vperm.slane %v39, 0
    %v56 = vperm.slane %v40, 0
    %v57 = vperm.slane %v41, 0
    %v58 = vperm.slane %v42, 0
    %v59 = vperm.slane %v43, 0
    %v68 = vadd.f32 %v28, %v52
    %v69 = vadd.f32 %v29, %v53
    %v70 = vadd.f32 %v30, %v54
    %v71 = vadd.f32 %v31, %v55
    %v72 = vadd.f32 %v32, %v56
    %v73 = vadd.f32 %v33, %v57
    %v74 = vadd.f32 %v34, %v58
    %v75 = vadd.f32 %v35, %v59
    %vm76 = vcmask 254976
    %77 = vst.msk [vmem:[#allocation5] sm:$0x3] %vm76, %v68
    %78 = vst.msk [vmem:[#allocation5 + $0x2] sm:$0x3] %vm76, %v69
    %79 = vst.msk [vmem:[#allocation5 + $0x4] sm:$0x3] %vm76, %v70
    %80 = vst.msk [vmem:[#allocation5 + $0x6] sm:$0x3] %vm76, %v71
    %81 = vst.msk [vmem:[#allocation5 + $0x8] sm:$0x3] %vm76, %v72
    %82 = vst.msk [vmem:[#allocation5 + $0xa] sm:$0x3] %vm76, %v73
    %83 = vst.msk [vmem:[#allocation5 + $0xc] sm:$0x3] %vm76, %v74
    %84 = vst.msk [vmem:[#allocation5 + $0xe] sm:$0x3] %vm76, %v75
    // Predicated region
    $region14: #{positional_encoding_forward.1} parent=1 // pred_check
      _
    $region15: #{positional_encoding_forward.1} parent=1 // pred_check_branch
      %86 = sbr.rel (0) target = $region17
    $region16: #{positional_encoding_forward.1} parent=1 // pred_region
      %88 = vsyncadd [#allocation4], 0
      %s89 = sshll.u32 [#allocation5], 4
      %s90 = int_to_ptr.vmem [resolvable:$true] %s89
      %s91 = sshll.u32 %s2, 4
      %s92 = int_to_ptr.hbm [resolvable:$true] %s91
      %97 = dma.vmem_to_hbm [thread:$0]  %s90, 256, %s92, [#allocation4], 32, 32, 2
    $region17: #{positional_encoding_forward.1} parent=1 // pred_fallthru
      _
    // Predicated region
    $region18: #{positional_encoding_forward.1} parent=1 // pred_check
      _
    $region19: #{positional_encoding_forward.1} parent=1 // pred_check_branch
      %99 = sbr.rel (0) target = $region21
    $region20: #{positional_encoding_forward.1} parent=1 // pred_region
      %101 = dma.done [#allocation4], 256
    $region21: #{positional_encoding_forward.1} parent=1 // pred_fallthru
      _
    %102 = vsyncpa [#allocation3], 1
    %103 = vsyncpa [#allocation4], 1

</llo_original>
